<compile_context>
chip_gen: v7x
topology: tpu7x:2x2x1
jax: 0.10.0
libtpu: 0.0.40
codegen_flags: <defaults>
</compile_context>

<pallas_src>
import numpy as np

import jax
import jax.numpy as jnp
from jax.experimental import pallas as pl
from jax.experimental.pallas import tpu as pltpu


# ----------------------------------------------------------------------------
# pltpu.roll sign-convention probe (cached).  We need shifted[k] = x[(k+off)%N];
# the probe tells us whether pltpu.roll matches jnp.roll (shift moves data to
# higher indices) so the static tap shifts are built with the right sign.
# ----------------------------------------------------------------------------
_ROLL_SIGN = None


def _roll_sign():
    global _ROLL_SIGN
    if _ROLL_SIGN is None:
        def probe_kernel(x_ref, o_ref):
            o_ref[...] = pltpu.roll(x_ref[...], 1, axis=1)

        x = jnp.broadcast_to(jnp.arange(128, dtype=jnp.float32), (8, 128))
        y = pl.pallas_call(
            probe_kernel,
            out_shape=jax.ShapeDtypeStruct((8, 128), jnp.float32),
        )(x)
        # jnp.roll convention: result[1] == x[0] == 0.
        _ROLL_SIGN = 1 if abs(float(y[0, 1])) < 0.5 else -1
    return _ROLL_SIGN


def _tpu_plan():
    """Return (tensorcores_per_chip, per-step VMEM working budget in bytes)."""
    kind = ""
    try:
        kind = jax.devices()[0].device_kind.lower()
    except Exception:
        pass
    vmem_phys = 128 << 20
    try:
        vmem_phys = int(pltpu.get_tpu_info().vmem_capacity_bytes)
    except Exception:
        pass
    # 2 TensorCores per chip on v7x (and v4/v5p megacore); 1 on v5e/v6e.
    cores = 2 if any(tag in kind for tag in ("v7", "v4", "v5p")) else 1
    # Keep the pipeline working set well inside scoped VMEM on every gen
    # (v7x has only 64 MiB physical per TC).
    budget = min(max(8 << 20, vmem_phys // 4), 28 << 20)
    return cores, budget


def _make_cbam_kernel(shifts):
    """shifts: static per-tap lane-roll amounts (len K*K)."""

    def kernel(x_ref, w1t_ref, w2_ref, wa_ref, wm_ref, out_ref):
        x = x_ref[...].astype(jnp.float32)        # (Bblk, C, HW), lane-dense
        bb = x.shape[0]

        # ---------------- Channel attention (exact f32, VPU/XLU) ----------------
        # AdaptiveAvg/MaxPool2d(1): single reduction over the flattened HW lanes.
        avg_c = jnp.mean(x, axis=2, keepdims=True)               # (Bblk, C, 1)
        max_c = jnp.max(x, axis=2, keepdims=True)                # (Bblk, C, 1)
        # Both MLP branches in one pass (stacked along the leading axis).
        pooled = jnp.concatenate([avg_c, max_c], axis=0)         # (2*Bblk, C, 1)
        # h[b, r] = sum_c W1[r, c] * v[b, c]    (sublane reduce over C)
        h = jnp.sum(w1t_ref[...][None] * pooled, axis=1, keepdims=True)
        h = jnp.maximum(h, 0.0)                                  # (2*Bblk, 1, Cr)
        # o[b, c] = sum_r W2[c, r] * h[b, r]    (lane reduce over Cr)
        o = jnp.sum(w2_ref[...][None] * h, axis=2, keepdims=True)  # (2*Bblk, C, 1)
        ca = jax.nn.sigmoid(o[:bb] + o[bb:])                     # (Bblk, C, 1)
        x_ca = x * ca                                            # (Bblk, C, HW)

        # ---------------- Spatial attention: 49-tap roll + MAC ----------------
        avg_s = jnp.mean(x_ca, axis=1)                           # (Bblk, HW)
        max_s = jnp.max(x_ca, axis=1)                            # (Bblk, HW)
        wa = wa_ref[...]                                         # (K*K, HW) weight*mask rows
        wm = wm_ref[...]                                         # (K*K, HW)
        conv = jnp.zeros(avg_s.shape, jnp.float32)
        for t, s in enumerate(shifts):                           # static unroll, K*K taps
            ra = pltpu.roll(avg_s, s, axis=1) if s else avg_s    # XLU lane rotate
            rm = pltpu.roll(max_s, s, axis=1) if s else max_s
            conv = conv + ra * wa[t][None, :] + rm * wm[t][None, :]
        sa = jax.nn.sigmoid(conv)                                # (Bblk, HW)

        out_ref[...] = (x_ca * sa[:, None, :]).astype(out_ref.dtype)

    return kernel


def cbam_pallas(x, w1, w2, w_spatial, *, kernel_size=7):
    B, C, H, W = x.shape
    Cr = w1.shape[0]
    HW = H * W
    P = kernel_size // 2
    K2 = kernel_size * kernel_size

    # Lane-dense layout: flatten spatial dims; minor dim HW is a 128-multiple here.
    x_flat = jnp.reshape(x, (B, C, HW))
    out_dtype = x.dtype
    w1t = jnp.transpose(w1).astype(jnp.float32)          # (C, Cr) == W1^T
    w2f = w2.astype(jnp.float32)                         # (C, Cr)

    # -------- per-tap weighted validity rows (parameter-only preprocessing) --------
    ii = np.arange(HW) // W
    jj = np.arange(HW) % W
    taps = [(di, dj) for di in range(-P, P + 1) for dj in range(-P, P + 1)]
    valid = np.stack(
        [((ii + di >= 0) & (ii + di < H) & (jj + dj >= 0) & (jj + dj < W)).astype(np.float32)
         for (di, dj) in taps])                          # (K*K, HW) zero-padding mask
    w_flat = jnp.reshape(w_spatial[0], (2, K2)).astype(jnp.float32)   # (2, K*K)
    wa_rows = w_flat[0][:, None] * jnp.asarray(valid)    # avg-channel tap rows
    wm_rows = w_flat[1][:, None] * jnp.asarray(valid)    # max-channel tap rows

    sign = _roll_sign()
    shifts = [(-sign * (di * W + dj)) % HW for (di, dj) in taps]

    # -------- gen-aware batch blocking + explicit VMEM sizing --------
    cores, budget = _tpu_plan()
    itm_in = x_flat.dtype.itemsize
    itm_out = jnp.dtype(out_dtype).itemsize
    per_img = 2 * C * HW * (itm_in + itm_out)            # double-buffered in + out blocks
    per_img += 3 * C * HW * 4                            # in-kernel f32 temporaries
    fixed = 2 * 2 * K2 * HW * 4 + 2 * 2 * C * Cr * 4     # tap rows + MLP weights (dbl-buffered)
    bblk = max(1, min(B, (budget - fixed) // max(per_img, 1)))
    if cores >= 2 and B >= 2:
        bblk = min(bblk, max(1, B // 2))                 # keep >= 2 parallel steps for 2-TC chips
    while B % bblk:
        bblk -= 1
    grid = (B // bblk,)

    footprint = fixed + per_img * bblk + (4 << 20)       # + headroom for compiler scratch
    vmem_limit = int(min(max(footprint, 32 << 20), 48 << 20))

    kernel = _make_cbam_kernel(shifts)

    out = pl.pallas_call(
        kernel,
        out_shape=jax.ShapeDtypeStruct((B, C, HW), out_dtype),
        grid_spec=pltpu.PrefetchScalarGridSpec(
            num_scalar_prefetch=0,
            grid=grid,
            in_specs=[
                pl.BlockSpec((bblk, C, HW), lambda b: (b, 0, 0)),   # x (lane-dense)
                pl.BlockSpec((C, Cr), lambda b: (0, 0)),            # W1^T (grid-constant)
                pl.BlockSpec((C, Cr), lambda b: (0, 0)),            # W2   (grid-constant)
                pl.BlockSpec((K2, HW), lambda b: (0, 0)),           # avg-channel tap rows
                pl.BlockSpec((K2, HW), lambda b: (0, 0)),           # max-channel tap rows
            ],
            out_specs=pl.BlockSpec((bblk, C, HW), lambda b: (b, 0, 0)),
        ),
        compiler_params=pltpu.CompilerParams(
            dimension_semantics=("parallel",),
            vmem_limit_bytes=vmem_limit),
    )(x_flat, w1t, w2f, wa_rows, wm_rows)

    return jnp.reshape(out, (B, C, H, W))


def cbam_reference(x, w1, w2, w_spatial, *, kernel_size=7):
    """Pure-JAX reference matching the PyTorch module semantics."""
    P = kernel_size // 2
    avg = jnp.mean(x, axis=(2, 3))
    mx = jnp.max(x, axis=(2, 3))

    def mlp(v):
        h = jnp.maximum(jnp.dot(v, w1.T, precision=jax.lax.Precision.HIGHEST), 0.0)
        return jnp.dot(h, w2.T, precision=jax.lax.Precision.HIGHEST)

    ca = jax.nn.sigmoid(mlp(avg) + mlp(mx))[:, :, None, None]
    x = x * ca

    avg_s = jnp.mean(x, axis=1, keepdims=True)
    max_s = jnp.max(x, axis=1, keepdims=True)
    inp = jnp.concatenate([avg_s, max_s], axis=1)
    conv = jax.lax.conv_general_dilated(
        inp, w_spatial, window_strides=(1, 1),
        padding=[(P, P), (P, P)],
        dimension_numbers=('NCHW', 'OIHW', 'NCHW'),
        precision=jax.lax.Precision.HIGHEST)
    sa = jax.nn.sigmoid(conv)
    return x * sa


if __name__ == "__main__":
    key = jax.random.PRNGKey(0)
    kx, k1, k2, k3 = jax.random.split(key, 4)

    B, C, H, W = 2, 32, 16, 16        # in_planes=32, ratio=16 -> hidden = 2
    ratio, ksize = 16, 7
    Cr = C // ratio

    x = jax.random.normal(kx, (B, C, H, W), jnp.float32)
    # Deterministic synthetic parameters (shapes from the module's __init__).
    w1 = jax.random.normal(k1, (Cr, C), jnp.float32) * 0.2   # Conv2d(C, C//r, 1, bias=False)
    w2 = jax.random.normal(k2, (C, Cr), jnp.float32) * 0.2   # Conv2d(C//r, C, 1, bias=False)
    w_sp = jax.random.normal(k3, (1, 2, ksize, ksize), jnp.float32) * 0.1  # Conv2d(2, 1, 7, pad=3)

    out = jax.block_until_ready(cbam_pallas(x, w1, w2, w_sp, kernel_size=ksize))
    ref = jax.block_until_ready(cbam_reference(x, w1, w2, w_sp, kernel_size=ksize))

    assert out.shape == (B, C, H, W)
    np.testing.assert_allclose(np.asarray(out), np.asarray(ref), atol=2e-3, rtol=2e-3)

    print("KERNEL_OK")
</pallas_src>

<mosaic_0001>
module attributes {stable_mosaic.version = 11 : i64} {
  func.func @probe_kernel(%arg0: memref<8x128xf32, #tpu.memory_space<vmem>>, %arg1: memref<8x128xf32, #tpu.memory_space<vmem>>) attributes {dimension_semantics = [], scalar_prefetch = 0 : i64, scratch_operands = 0 : i64, tpu.core_type = #tpu.core_type<tc>} {
    %c0 = arith.constant 0 : index
    %c0_0 = arith.constant 0 : index
    %0 = vector.load %arg0[%c0, %c0_0] : memref<8x128xf32, #tpu.memory_space<vmem>>, vector<8x128xf32>
    %c1_i32 = arith.constant 1 : i32
    %1 = tpu.dynamic_rotate %0 by %c1_i32 dim 1 : vector<8x128xf32>, i32 -> vector<8x128xf32>
    %c0_1 = arith.constant 0 : index
    %c0_2 = arith.constant 0 : index
    %2 = vector.load %arg1[%c0_1, %c0_2] : memref<8x128xf32, #tpu.memory_space<vmem>>, vector<8x128xf32>
    tpu.vector_store %arg1[%c0_1, %c0_2], %1 {strides = array<i32>} : memref<8x128xf32, #tpu.memory_space<vmem>>, vector<8x128xf32>,
    return
  }
}

</mosaic_0001>

<llo_original>
// kernel: tpu_custom_call.1
$region0: #{tpu_custom_call.1}
  #allocation0 [shape = 'u32[]', space=smem, size = 0x4, offset = 0x4, fixed_abs, tag = 'smem constant byte address 0x4 - core index']
  #allocation1 [shape = 'u32[144,128]{1,0:T(1,128)}', space=vmem, size = 0x12000, scoped, tag = 'internal scratch']
  %s0 = inlined_call_operand.hbm [shape: f32[8,128], index: 0, kind: input, shape index: {}]
  %s1 = inlined_call_operand.hbm [shape: f32[8,128], index: 1, kind: output, shape index: {}]
  %s2 = sld [smem:[#allocation0]]
  $region18: #{tpu_custom_call.1} parent=0
    _
  %s4 = ssub.s32 1, %s2
  %s5 = scalar_select 0, %s4, %s2
  $region1: #{tpu_custom_call.1} parent=0
    #allocation2 [shape = 'u8[4096]{0}', space=vmem, size = 0x1000, scoped, tag = 'input window, operand 0, single buffered']
    #allocation3 [shape = 's32[1]{0}', space=sflag, size = 0x4, scoped, tag = 'scoped memory for tpu_custom_call.1']
    #allocation4 [shape = 's32[1]{0}', space=sflag, size = 0x4, scoped, tag = 'scoped memory for tpu_custom_call.1']
    #allocation5 [shape = 'u8[4096]{0}', space=vmem, size = 0x1000, scoped, tag = 'output window, operand 0, single buffered']
    %6 = vsyncpa [#allocation3], 0
    %7 = vsyncpa [#allocation4], 0
    // Predicated region
    $region2: #{tpu_custom_call.1} parent=1 // pred_check
      _
    $region3: #{tpu_custom_call.1} parent=1 // pred_check_branch
      %9 = sbr.rel (0) target = $region5
    $region4: #{tpu_custom_call.1} parent=1 // pred_region
      %s11 = ssub.s32 128, 128
      %12 = vsyncadd [#allocation3], %s11
      %s14 = sshll.u32 [#allocation2], 4
      %s15 = int_to_ptr.vmem [resolvable:$true] %s14
      %17 = dma.hbm_to_vmem [thread:$0]  %s0, 128, %s15, [#allocation3]
    $region5: #{tpu_custom_call.1} parent=1 // pred_fallthru
      _
    // Predicated region
    $region6: #{tpu_custom_call.1} parent=1 // pred_check
      _
    $region7: #{tpu_custom_call.1} parent=1 // pred_check_branch
      %19 = sbr.rel (0) target = $region9
    $region8: #{tpu_custom_call.1} parent=1 // pred_region
      %20 = dma.done [#allocation3], 128
    $region9: #{tpu_custom_call.1} parent=1 // pred_fallthru
      _
    %v21 = vld [vmem:[#allocation2] sm:$0xff]
    %22 = vrot.lane.b32.xlu0 %v21, 1
    %v23 = vpop.permute.xlu0 %22
    %24 = vst [vmem:[#allocation5] sm:$0xff] %v23
    // Predicated region
    $region10: #{tpu_custom_call.1} parent=1 // pred_check
      _
    $region11: #{tpu_custom_call.1} parent=1 // pred_check_branch
      %26 = sbr.rel (0) target = $region13
    $region12: #{tpu_custom_call.1} parent=1 // pred_region
      %s28 = ssub.s32 128, 128
      %29 = vsyncadd [#allocation4], %s28
      %s31 = sshll.u32 [#allocation5], 4
      %s32 = int_to_ptr.vmem [resolvable:$true] %s31
      %34 = dma.vmem_to_hbm [thread:$0]  %s32, 128, %s1, [#allocation4]
    $region13: #{tpu_custom_call.1} parent=1 // pred_fallthru
      _
    // Predicated region
    $region14: #{tpu_custom_call.1} parent=1 // pred_check
      _
    $region15: #{tpu_custom_call.1} parent=1 // pred_check_branch
      %36 = sbr.rel (0) target = $region17
    $region16: #{tpu_custom_call.1} parent=1 // pred_region
      %37 = dma.done [#allocation4], 128
    $region17: #{tpu_custom_call.1} parent=1 // pred_fallthru
      _
    %38 = vsyncpa [#allocation3], 1
    %39 = vsyncpa [#allocation4], 1

</llo_original>
